<compile_context>
chip_gen: v7x
topology: tpu7x:2x2x1
jax: 0.10.0
libtpu: 0.0.40
codegen_flags: <defaults>
</compile_context>

<pallas_src>
import functools

import jax
import jax.numpy as jnp
from jax.experimental import pallas as pl
from jax.experimental.pallas import tpu as pltpu

BN_EPS = 1e-5
VMEM_LIMIT_BYTES = 48 * 1024 * 1024      # safe on v5e/v6e (128 MiB) and v7x (64 MiB physical)
FUSED_VMEM_BUDGET = 40 * 1024 * 1024     # headroom below the scoped limit for the fused path


def _round_up(x: int, m: int) -> int:
    return (x + m - 1) // m * m


def _maybe_pad2(a, rows: int, cols: int):
    """Zero-pad a 2-D array only if it is not already (rows, cols)."""
    if a.shape == (rows, cols):
        return a
    return jnp.pad(a, ((0, rows - a.shape[0]), (0, cols - a.shape[1])))


# --------------------------------------------------------------------------------------
# Fused kernel: grid = (2, nb).  Phase 0 = Linear1 + stats, Phase 1 = BN + ReLU + Linear2.
# h lives only in a bf16 VMEM scratch; only x (in) and out (out) stream through HBM.
# --------------------------------------------------------------------------------------
def _fused_mlp_kernel(x_ref, w1_ref, gamma_ref, beta_ref, w2_ref, b2_ref, o_ref,
                      h_vmem, stats_vmem, ss_vmem, *, inv_n, block_b):
    phase = pl.program_id(0)
    i = pl.program_id(1)
    row = pl.multiple_of(i * block_b, block_b)

    @pl.when((phase == 0) & (i == 0))
    def _init_stats():
        stats_vmem[...] = jnp.zeros_like(stats_vmem)

    @pl.when(phase == 0)
    def _linear1_and_stats():
        # [tb, Din] @ [Din, H] -> fp32 accumulator on the MXU (bf16 inputs).
        h = jnp.dot(x_ref[...].astype(jnp.bfloat16), w1_ref[...],
                    preferred_element_type=jnp.float32)
        # Stash h as bf16 in the resident VMEM scratch (no HBM round-trip).
        h_vmem[pl.ds(row, block_b), :] = h.astype(jnp.bfloat16)
        # Exact full-batch statistics from the fp32 accumulator (row-slice adds, no concat).
        # Note: E[x^2]-E[x]^2 in fp32 can cancel if |mean| >> std; clamped below.
        stats_vmem[0:1, :] += jnp.sum(h, axis=0, keepdims=True)
        stats_vmem[1:2, :] += jnp.sum(h * h, axis=0, keepdims=True)

    @pl.when((phase == 1) & (i == 0))
    def _fold_bn_once():
        mean = stats_vmem[0:1, :] * inv_n
        ex2 = stats_vmem[1:2, :] * inv_n
        var = jnp.maximum(ex2 - mean * mean, 0.0)          # biased variance (BN train mode)
        scale = gamma_ref[...] * jax.lax.rsqrt(var + BN_EPS)
        ss_vmem[0:1, :] = scale
        ss_vmem[1:2, :] = beta_ref[...] - mean * scale

    @pl.when(phase == 1)
    def _bn_relu_linear2():
        h = h_vmem[pl.ds(row, block_b), :].astype(jnp.float32)
        h_act = jnp.maximum(h * ss_vmem[0:1, :] + ss_vmem[1:2, :], 0.0)
        out = jnp.dot(h_act.astype(jnp.bfloat16), w2_ref[...],
                      preferred_element_type=jnp.float32)
        o_ref[...] = (out + b2_ref[...]).astype(o_ref.dtype)


# --------------------------------------------------------------------------------------
# Fallback two-pass kernels (large batches whose full h does not fit VMEM).
# --------------------------------------------------------------------------------------
def _linear1_stats_kernel(x_ref, w1_ref, h_ref, stats_ref):
    i = pl.program_id(0)
    h = jnp.dot(x_ref[...].astype(jnp.bfloat16), w1_ref[...],
                preferred_element_type=jnp.float32)
    h_ref[...] = h.astype(jnp.bfloat16)     # bf16 h writeback (half the HBM traffic)

    @pl.when(i == 0)
    def _():
        stats_ref[...] = jnp.zeros_like(stats_ref)

    stats_ref[0:1, :] += jnp.sum(h, axis=0, keepdims=True)
    stats_ref[1:2, :] += jnp.sum(h * h, axis=0, keepdims=True)


def _bn_relu_linear2_kernel(h_ref, scale_ref, shift_ref, w2_ref, b2_ref, o_ref):
    h_act = jnp.maximum(
        h_ref[...].astype(jnp.float32) * scale_ref[...] + shift_ref[...], 0.0)
    out = jnp.dot(h_act.astype(jnp.bfloat16), w2_ref[...],
                  preferred_element_type=jnp.float32)
    o_ref[...] = (out + b2_ref[...]).astype(o_ref.dtype)


# --------------------------------------------------------------------------------------
# Wrapper.
# --------------------------------------------------------------------------------------
def mlp_forward(x, w1, gamma, beta, w2, b2, *, block_b: int = 512,
                out_dtype=None, allow_fused: bool = True):
    """x: [B, Din]; w1: [Din, H]; gamma/beta: [1, H]; w2: [H, Dout]; b2: [1, Dout]."""
    B, Din = x.shape
    H = w1.shape[1]
    Dout = w2.shape[1]
    out_dtype = x.dtype if out_dtype is None else jnp.dtype(out_dtype)

    # Lane-align feature dims (128); sublane/tile-align the batch.
    din_p = _round_up(Din, 128)
    h_p = _round_up(H, 128)
    dout_p = _round_up(Dout, 128)
    block_b = max(8, _round_up(min(block_b, _round_up(B, 8)), 8))
    b_p = _round_up(B, block_b)
    nb = b_p // block_b

    # Weights / per-feature params: small one-time pad+cast, stay VMEM-resident.
    w1p = _maybe_pad2(w1.astype(jnp.bfloat16), din_p, h_p)
    w2p = _maybe_pad2(w2.astype(jnp.bfloat16), h_p, dout_p)
    gammap = _maybe_pad2(gamma.astype(jnp.float32), 1, h_p)
    betap = _maybe_pad2(beta.astype(jnp.float32), 1, h_p)
    b2p = _maybe_pad2(b2.astype(jnp.float32), 1, dout_p)

    # x: no wrapper cast (cast to bf16 in-kernel); zero-pad only when needed.  Padded rows
    # are zero -> contribute nothing to sum/sumsq; divisor below uses the true batch size.
    xp = _maybe_pad2(x, b_p, din_p)

    resident = pl.BlockSpec(memory_space=pltpu.MemorySpace.VMEM)
    inv_n = 1.0 / B  # NOTE: requires a static batch size (Python float baked into kernel).
    x_bytes = xp.dtype.itemsize
    out_bytes = out_dtype.itemsize
    flops_l1 = 2 * b_p * din_p * h_p
    flops_l2 = 2 * b_p * h_p * dout_p
    w_bytes = din_p * h_p * 2 + h_p * dout_p * 2

    # VMEM budget for the fused path: resident h scratch + weights + stream double-buffers.
    fused_vmem = (b_p * h_p * 2                       # h scratch (bf16)
                  + w_bytes                           # resident w1/w2
                  + 2 * block_b * din_p * x_bytes     # x double buffer
                  + 2 * block_b * dout_p * out_bytes  # out double buffer
                  + 16 * h_p * 4 + dout_p * 4)        # stats/scale/shift/gamma/beta/b2

    if allow_fused and fused_vmem <= FUSED_VMEM_BUDGET:
        # ---- Fused single kernel: h never leaves VMEM ----------------------------------
        kernel = functools.partial(_fused_mlp_kernel, inv_n=inv_n, block_b=block_b)
        out_p = pl.pallas_call(
            kernel,
            grid=(2, nb),
            in_specs=[
                # phase 0: stream batch tiles; phase 1: hold the last tile (no re-fetch).
                pl.BlockSpec((block_b, din_p),
                             lambda p, i: (i * (1 - p) + (nb - 1) * p, 0)),
                resident,   # w1
                resident,   # gamma
                resident,   # beta
                resident,   # w2
                resident,   # b2
            ],
            # phase 0: constant block (never written -> never flushed); phase 1: stream out.
            out_specs=pl.BlockSpec((block_b, dout_p), lambda p, i: (i * p, 0)),
            out_shape=jax.ShapeDtypeStruct((b_p, dout_p), out_dtype),
            scratch_shapes=[
                pltpu.VMEM((b_p, h_p), jnp.bfloat16),   # resident h
                pltpu.VMEM((2, h_p), jnp.float32),      # sum / sumsq
                pltpu.VMEM((2, h_p), jnp.float32),      # folded scale / shift
            ],
            compiler_params=pltpu.CompilerParams(
                dimension_semantics=("arbitrary", "arbitrary"),
                vmem_limit_bytes=VMEM_LIMIT_BYTES),
            cost_estimate=pl.CostEstimate(
                flops=flops_l1 + flops_l2,
                transcendentals=h_p,
                bytes_accessed=b_p * din_p * x_bytes + b_p * dout_p * out_bytes + w_bytes),
        )(xp, w1p, gammap, betap, w2p, b2p)
    else:
        # ---- Fallback: two passes, h round-trips HBM as bf16 ---------------------------
        h, stats = pl.pallas_call(
            _linear1_stats_kernel,
            grid=(nb,),
            in_specs=[pl.BlockSpec((block_b, din_p), lambda i: (i, 0)), resident],
            out_specs=[pl.BlockSpec((block_b, h_p), lambda i: (i, 0)),
                       pl.BlockSpec((8, h_p), lambda i: (0, 0))],   # resident accumulator
            out_shape=[jax.ShapeDtypeStruct((b_p, h_p), jnp.bfloat16),
                       jax.ShapeDtypeStruct((8, h_p), jnp.float32)],
            compiler_params=pltpu.CompilerParams(
                dimension_semantics=("arbitrary",),
                vmem_limit_bytes=VMEM_LIMIT_BYTES),
            cost_estimate=pl.CostEstimate(
                flops=flops_l1, transcendentals=0,
                bytes_accessed=b_p * din_p * x_bytes + din_p * h_p * 2
                + b_p * h_p * 2 + 8 * h_p * 4),
        )(xp, w1p)

        # Fold BN once outside the kernel (tiny [1, H] op), pass scale/shift as residents.
        mean = stats[0:1, :] * inv_n
        ex2 = stats[1:2, :] * inv_n
        var = jnp.maximum(ex2 - mean * mean, 0.0)
        scale = gammap * jax.lax.rsqrt(var + BN_EPS)
        shift = betap - mean * scale

        out_p = pl.pallas_call(
            _bn_relu_linear2_kernel,
            grid=(nb,),
            in_specs=[pl.BlockSpec((block_b, h_p), lambda i: (i, 0)),
                      resident, resident, resident, resident],
            out_specs=pl.BlockSpec((block_b, dout_p), lambda i: (i, 0)),
            out_shape=jax.ShapeDtypeStruct((b_p, dout_p), out_dtype),
            compiler_params=pltpu.CompilerParams(
                dimension_semantics=("parallel",),
                vmem_limit_bytes=VMEM_LIMIT_BYTES),
            cost_estimate=pl.CostEstimate(
                flops=flops_l2, transcendentals=0,
                bytes_accessed=b_p * h_p * 2 + h_p * dout_p * 2
                + b_p * dout_p * out_bytes),
        )(h, scale, shift, w2p, b2p)

    if (b_p, dout_p) != (B, Dout):
        out_p = out_p[:B, :Dout]
    return out_p


# --------------------------------------------------------------------------------------
# References.
# --------------------------------------------------------------------------------------
def reference_forward_f32(x, w1, gamma, beta, w2, b2):
    h = x @ w1
    mean = jnp.mean(h, axis=0, keepdims=True)
    var = jnp.mean((h - mean) ** 2, axis=0, keepdims=True)
    h = (h - mean) / jnp.sqrt(var + BN_EPS) * gamma + beta
    h = jnp.maximum(h, 0.0)
    return h @ w2 + b2


def reference_forward_bf16(x, w1, gamma, beta, w2, b2):
    # Mirrors the kernel numerics: bf16 MXU inputs / fp32 accumulation, fp32 stats via
    # E[x^2]-E[x]^2, bf16 h round-trip before the folded BN+ReLU, bf16 second matmul.
    h32 = jnp.dot(x.astype(jnp.bfloat16), w1.astype(jnp.bfloat16),
                  preferred_element_type=jnp.float32)
    mean = jnp.mean(h32, axis=0, keepdims=True)
    var = jnp.maximum(jnp.mean(h32 * h32, axis=0, keepdims=True) - mean * mean, 0.0)
    scale = gamma * jax.lax.rsqrt(var + BN_EPS)
    shift = beta - mean * scale
    h = h32.astype(jnp.bfloat16).astype(jnp.float32)
    ha = jnp.maximum(h * scale + shift, 0.0)
    return jnp.dot(ha.astype(jnp.bfloat16), w2.astype(jnp.bfloat16),
                   preferred_element_type=jnp.float32) + b2


if __name__ == "__main__":
    # Small, deliberately non-aligned shapes to exercise padding + multi-tile batch
    # (B=112 with block_b=64 -> 2 batch tiles + 16 zero-padded rows).
    B, INPUT_DIM, HIDDEN_DIM, OUTPUT_DIM = 112, 96, 80, 96

    key = jax.random.PRNGKey(0)
    kx, kw1, kw2, kb2, kg, kbt = jax.random.split(key, 6)

    x = jax.random.normal(kx, (B, INPUT_DIM), dtype=jnp.float32)
    w1 = jax.random.normal(kw1, (INPUT_DIM, HIDDEN_DIM), dtype=jnp.float32) * 0.05
    gamma = 1.0 + 0.1 * jax.random.normal(kg, (1, HIDDEN_DIM), dtype=jnp.float32)
    beta = 0.1 * jax.random.normal(kbt, (1, HIDDEN_DIM), dtype=jnp.float32)
    w2 = jax.random.normal(kw2, (HIDDEN_DIM, OUTPUT_DIM), dtype=jnp.float32) * 0.05
    b2 = jax.random.normal(kb2, (1, OUTPUT_DIM), dtype=jnp.float32) * 0.05

    ref_bf16 = reference_forward_bf16(x, w1, gamma, beta, w2, b2)
    ref_f32 = reference_forward_f32(x, w1, gamma, beta, w2, b2)

    # Fused single-kernel path (h stays in VMEM).
    out_fused = jax.block_until_ready(
        mlp_forward(x, w1, gamma, beta, w2, b2, block_b=64))
    assert out_fused.shape == (B, OUTPUT_DIM)
    assert out_fused.dtype == x.dtype

    # Two-pass fallback path (forced, to exercise both code paths).
    out_2p = jax.block_until_ready(
        mlp_forward(x, w1, gamma, beta, w2, b2, block_b=64, allow_fused=False))
    assert out_2p.shape == (B, OUTPUT_DIM)

    for name, out in (("fused", out_fused), ("two_pass", out_2p)):
        err_b = float(jnp.max(jnp.abs(out - ref_bf16)))
        assert jnp.allclose(out, ref_bf16, atol=1e-2, rtol=1e-2), \
            f"{name}: bf16-ref mismatch, max abs err {err_b}"
        err_f = float(jnp.max(jnp.abs(out - ref_f32)))
        assert jnp.allclose(out, ref_f32, atol=5e-2, rtol=5e-2), \
            f"{name}: fp32-ref mismatch, max abs err {err_f}"

    print("KERNEL_OK")
</pallas_src>

<mosaic_0001>
module attributes {stable_mosaic.version = 11 : i64} {
  func.func @_fused_mlp_kernel(%arg0: i32, %arg1: i32, %arg2: memref<64x128xf32, #tpu.memory_space<vmem>>, %arg3: memref<128x128xbf16, #tpu.memory_space<vmem>>, %arg4: memref<1x128xf32, #tpu.memory_space<vmem>>, %arg5: memref<1x128xf32, #tpu.memory_space<vmem>>, %arg6: memref<128x128xbf16, #tpu.memory_space<vmem>>, %arg7: memref<1x128xf32, #tpu.memory_space<vmem>>, %arg8: memref<64x128xf32, #tpu.memory_space<vmem>>, %arg9: memref<128x128xbf16, #tpu.memory_space<vmem>>, %arg10: memref<2x128xf32, #tpu.memory_space<vmem>>, %arg11: memref<2x128xf32, #tpu.memory_space<vmem>>) attributes {dimension_semantics = [#tpu.dimension_semantics<arbitrary>, #tpu.dimension_semantics<arbitrary>], iteration_bounds = array<i64: 2, 2>, scalar_prefetch = 0 : i64, scratch_operands = 3 : i64, tpu.core_type = #tpu.core_type<tc>, window_params = [{transform_indices = @transform_0, window_bounds = array<i64: 64, 128>}, {pipeline_mode = #tpu.pipeline_mode<synchronous>, transform_indices = @transform_1, window_bounds = array<i64: 128, 128>}, {pipeline_mode = #tpu.pipeline_mode<synchronous>, transform_indices = @transform_2, window_bounds = array<i64: 1, 128>}, {pipeline_mode = #tpu.pipeline_mode<synchronous>, transform_indices = @transform_3, window_bounds = array<i64: 1, 128>}, {pipeline_mode = #tpu.pipeline_mode<synchronous>, transform_indices = @transform_4, window_bounds = array<i64: 128, 128>}, {pipeline_mode = #tpu.pipeline_mode<synchronous>, transform_indices = @transform_5, window_bounds = array<i64: 1, 128>}, {transform_indices = @transform_6, window_bounds = array<i64: 64, 128>}]} {
    %c64_i32 = arith.constant 64 : i32
    %0 = arith.muli %arg1, %c64_i32 : i32
    %1 = tpu.assume_multiple %0, 64 : i32
    %c0_i32 = arith.constant 0 : i32
    %2 = arith.cmpi eq, %arg0, %c0_i32 : i32
    %c0_i32_0 = arith.constant 0 : i32
    %3 = arith.cmpi eq, %arg1, %c0_i32_0 : i32
    %4 = arith.andi %2, %3 : i1
    %5 = arith.extui %4 : i1 to i32
    %c0_i32_1 = arith.constant 0 : i32
    %6 = arith.cmpi ne, %5, %c0_i32_1 : i32
    scf.if %6 {
      %cst = arith.constant 0.000000e+00 : f32
      %18 = vector.broadcast %cst : f32 to vector<2x128xf32>
      %c0 = arith.constant 0 : index
      %c0_8 = arith.constant 0 : index
      %19 = vector.load %arg10[%c0, %c0_8] : memref<2x128xf32, #tpu.memory_space<vmem>>, vector<2x128xf32>
      tpu.vector_store %arg10[%c0, %c0_8], %18 {strides = array<i32>} : memref<2x128xf32, #tpu.memory_space<vmem>>, vector<2x128xf32>,
    } else {
    }
    %c0_i32_2 = arith.constant 0 : i32
    %7 = arith.cmpi eq, %arg0, %c0_i32_2 : i32
    %8 = arith.extui %7 : i1 to i32
    %c0_i32_3 = arith.constant 0 : i32
    %9 = arith.cmpi ne, %8, %c0_i32_3 : i32
    scf.if %9 {
      %c0 = arith.constant 0 : index
      %c0_8 = arith.constant 0 : index
      %18 = vector.load %arg2[%c0, %c0_8] : memref<64x128xf32, #tpu.memory_space<vmem>>, vector<64x128xf32>
      %19 = arith.truncf %18 : vector<64x128xf32> to vector<64x128xbf16>
      %c0_9 = arith.constant 0 : index
      %c0_10 = arith.constant 0 : index
      %20 = vector.load %arg3[%c0_9, %c0_10] : memref<128x128xbf16, #tpu.memory_space<vmem>>, vector<128x128xbf16>
      %cst = arith.constant dense<0.000000e+00> : vector<64x128xf32>
      %21 = tpu.matmul %19, %20, %cst {dimension_numbers = #tpu.dot_dimension_numbers<[1], [0], [0], [1], [0, 0, 1, 1], [], []>} : vector<64x128xbf16>, vector<128x128xbf16>, vector<64x128xf32> -> vector<64x128xf32>
      %22 = arith.truncf %21 : vector<64x128xf32> to vector<64x128xbf16>
      %23 = arith.index_cast %1 : i32 to index
      %c0_11 = arith.constant 0 : index
      %24 = vector.load %arg9[%23, %c0_11] : memref<128x128xbf16, #tpu.memory_space<vmem>>, vector<64x128xbf16>
      tpu.vector_store %arg9[%23, %c0_11], %22 {strides = array<i32>} : memref<128x128xbf16, #tpu.memory_space<vmem>>, vector<64x128xbf16>,
      %c0_12 = arith.constant 0 : index
      %c0_13 = arith.constant 0 : index
      %25 = vector.load %arg10[%c0_12, %c0_13] : memref<2x128xf32, #tpu.memory_space<vmem>>, vector<1x128xf32>
      %cst_14 = arith.constant dense<0.000000e+00> : vector<128xf32>
      %26 = vector.multi_reduction <add>, %21, %cst_14 [0] : vector<64x128xf32> to vector<128xf32>
      %27 = vector.shape_cast %26 : vector<128xf32> to vector<1x128xf32>
      %28 = arith.addf %25, %27 : vector<1x128xf32>
      %c0_15 = arith.constant 0 : index
      %c0_16 = arith.constant 0 : index
      %29 = vector.load %arg10[%c0_15, %c0_16] : memref<2x128xf32, #tpu.memory_space<vmem>>, vector<1x128xf32>
      tpu.vector_store %arg10[%c0_15, %c0_16], %28 {strides = array<i32>} : memref<2x128xf32, #tpu.memory_space<vmem>>, vector<1x128xf32>,
      %c1 = arith.constant 1 : index
      %c0_17 = arith.constant 0 : index
      %30 = vector.load %arg10[%c1, %c0_17] : memref<2x128xf32, #tpu.memory_space<vmem>>, vector<1x128xf32>
      %31 = arith.mulf %21, %21 : vector<64x128xf32>
      %cst_18 = arith.constant dense<0.000000e+00> : vector<128xf32>
      %32 = vector.multi_reduction <add>, %31, %cst_18 [0] : vector<64x128xf32> to vector<128xf32>
      %33 = vector.shape_cast %32 : vector<128xf32> to vector<1x128xf32>
      %34 = arith.addf %30, %33 : vector<1x128xf32>
      %c1_19 = arith.constant 1 : index
      %c0_20 = arith.constant 0 : index
      %35 = vector.load %arg10[%c1_19, %c0_20] : memref<2x128xf32, #tpu.memory_space<vmem>>, vector<1x128xf32>
      tpu.vector_store %arg10[%c1_19, %c0_20], %34 {strides = array<i32>} : memref<2x128xf32, #tpu.memory_space<vmem>>, vector<1x128xf32>,
    } else {
    }
    %c1_i32 = arith.constant 1 : i32
    %10 = arith.cmpi eq, %arg0, %c1_i32 : i32
    %c0_i32_4 = arith.constant 0 : i32
    %11 = arith.cmpi eq, %arg1, %c0_i32_4 : i32
    %12 = arith.andi %10, %11 : i1
    %13 = arith.extui %12 : i1 to i32
    %c0_i32_5 = arith.constant 0 : i32
    %14 = arith.cmpi ne, %13, %c0_i32_5 : i32
    scf.if %14 {
      %c0 = arith.constant 0 : index
      %c0_8 = arith.constant 0 : index
      %18 = vector.load %arg10[%c0, %c0_8] : memref<2x128xf32, #tpu.memory_space<vmem>>, vector<1x128xf32>
      %cst = arith.constant 0.00892857183 : f32
      %19 = vector.broadcast %cst : f32 to vector<1x128xf32>
      %20 = arith.mulf %18, %19 : vector<1x128xf32>
      %c1 = arith.constant 1 : index
      %c0_9 = arith.constant 0 : index
      %21 = vector.load %arg10[%c1, %c0_9] : memref<2x128xf32, #tpu.memory_space<vmem>>, vector<1x128xf32>
      %cst_10 = arith.constant 0.00892857183 : f32
      %22 = vector.broadcast %cst_10 : f32 to vector<1x128xf32>
      %23 = arith.mulf %21, %22 : vector<1x128xf32>
      %24 = arith.mulf %20, %20 : vector<1x128xf32>
      %25 = arith.subf %23, %24 : vector<1x128xf32>
      %cst_11 = arith.constant 0.000000e+00 : f32
      %26 = vector.broadcast %cst_11 : f32 to vector<1x128xf32>
      %27 = arith.maximumf %25, %26 : vector<1x128xf32>
      %c0_12 = arith.constant 0 : index
      %c0_13 = arith.constant 0 : index
      %28 = vector.load %arg4[%c0_12, %c0_13] : memref<1x128xf32, #tpu.memory_space<vmem>>, vector<1x128xf32>
      %cst_14 = arith.constant 9.99999974E-6 : f32
      %29 = vector.broadcast %cst_14 : f32 to vector<1x128xf32>
      %30 = arith.addf %27, %29 : vector<1x128xf32>
      %31 = math.rsqrt %30 : vector<1x128xf32>
      %32 = arith.mulf %28, %31 : vector<1x128xf32>
      %c0_15 = arith.constant 0 : index
      %c0_16 = arith.constant 0 : index
      %33 = vector.load %arg11[%c0_15, %c0_16] : memref<2x128xf32, #tpu.memory_space<vmem>>, vector<1x128xf32>
      tpu.vector_store %arg11[%c0_15, %c0_16], %32 {strides = array<i32>} : memref<2x128xf32, #tpu.memory_space<vmem>>, vector<1x128xf32>,
      %c0_17 = arith.constant 0 : index
      %c0_18 = arith.constant 0 : index
      %34 = vector.load %arg5[%c0_17, %c0_18] : memref<1x128xf32, #tpu.memory_space<vmem>>, vector<1x128xf32>
      %35 = arith.mulf %20, %32 : vector<1x128xf32>
      %36 = arith.subf %34, %35 : vector<1x128xf32>
      %c1_19 = arith.constant 1 : index
      %c0_20 = arith.constant 0 : index
      %37 = vector.load %arg11[%c1_19, %c0_20] : memref<2x128xf32, #tpu.memory_space<vmem>>, vector<1x128xf32>
      tpu.vector_store %arg11[%c1_19, %c0_20], %36 {strides = array<i32>} : memref<2x128xf32, #tpu.memory_space<vmem>>, vector<1x128xf32>,
    } else {
    }
    %c1_i32_6 = arith.constant 1 : i32
    %15 = arith.cmpi eq, %arg0, %c1_i32_6 : i32
    %16 = arith.extui %15 : i1 to i32
    %c0_i32_7 = arith.constant 0 : i32
    %17 = arith.cmpi ne, %16, %c0_i32_7 : i32
    scf.if %17 {
      %18 = arith.index_cast %1 : i32 to index
      %c0 = arith.constant 0 : index
      %19 = vector.load %arg9[%18, %c0] : memref<128x128xbf16, #tpu.memory_space<vmem>>, vector<64x128xbf16>
      %20 = arith.extf %19 : vector<64x128xbf16> to vector<64x128xf32>
      %c0_8 = arith.constant 0 : index
      %c0_9 = arith.constant 0 : index
      %21 = vector.load %arg11[%c0_8, %c0_9] : memref<2x128xf32, #tpu.memory_space<vmem>>, vector<1x128xf32>
      %22 = vector.broadcast %21 : vector<1x128xf32> to vector<64x128xf32>
      %23 = arith.mulf %20, %22 : vector<64x128xf32>
      %c1 = arith.constant 1 : index
      %c0_10 = arith.constant 0 : index
      %24 = vector.load %arg11[%c1, %c0_10] : memref<2x128xf32, #tpu.memory_space<vmem>>, vector<1x128xf32>
      %25 = vector.broadcast %24 : vector<1x128xf32> to vector<64x128xf32>
      %26 = arith.addf %23, %25 : vector<64x128xf32>
      %cst = arith.constant 0.000000e+00 : f32
      %27 = vector.broadcast %cst : f32 to vector<64x128xf32>
      %28 = arith.maximumf %26, %27 : vector<64x128xf32>
      %29 = arith.truncf %28 : vector<64x128xf32> to vector<64x128xbf16>
      %c0_11 = arith.constant 0 : index
      %c0_12 = arith.constant 0 : index
      %30 = vector.load %arg6[%c0_11, %c0_12] : memref<128x128xbf16, #tpu.memory_space<vmem>>, vector<128x128xbf16>
      %cst_13 = arith.constant dense<0.000000e+00> : vector<64x128xf32>
      %31 = tpu.matmul %29, %30, %cst_13 {dimension_numbers = #tpu.dot_dimension_numbers<[1], [0], [0], [1], [0, 0, 1, 1], [], []>} : vector<64x128xbf16>, vector<128x128xbf16>, vector<64x128xf32> -> vector<64x128xf32>
      %c0_14 = arith.constant 0 : index
      %c0_15 = arith.constant 0 : index
      %32 = vector.load %arg7[%c0_14, %c0_15] : memref<1x128xf32, #tpu.memory_space<vmem>>, vector<1x128xf32>
      %33 = vector.broadcast %32 : vector<1x128xf32> to vector<64x128xf32>
      %34 = arith.addf %31, %33 : vector<64x128xf32>
      %c0_16 = arith.constant 0 : index
      %c0_17 = arith.constant 0 : index
      %35 = vector.load %arg8[%c0_16, %c0_17] : memref<64x128xf32, #tpu.memory_space<vmem>>, vector<64x128xf32>
      tpu.vector_store %arg8[%c0_16, %c0_17], %34 {strides = array<i32>} : memref<64x128xf32, #tpu.memory_space<vmem>>, vector<64x128xf32>,
    } else {
    }
    return
  }
  func.func @transform_0(%arg0: i32, %arg1: i32) -> (i32, i32) {
    %c1_i32 = arith.constant 1 : i32
    %0 = arith.subi %c1_i32, %arg0 : i32
    %1 = arith.muli %arg1, %0 : i32
    %c1_i32_0 = arith.constant 1 : i32
    %2 = arith.muli %c1_i32_0, %arg0 : i32
    %3 = arith.addi %1, %2 : i32
    %c0_i32 = arith.constant 0 : i32
    %c0_i32_1 = arith.constant 0 : i32
    return %3, %c0_i32 : i32, i32
  }
  func.func @transform_1(%arg0: i32, %arg1: i32) -> (i32, i32) {
    %c0_i32 = arith.constant 0 : i32
    %c0_i32_0 = arith.constant 0 : i32
    %c0_i32_1 = arith.constant 0 : i32
    return %c0_i32, %c0_i32_0 : i32, i32
  }
  func.func @transform_2(%arg0: i32, %arg1: i32) -> (i32, i32) {
    %c0_i32 = arith.constant 0 : i32
    %c0_i32_0 = arith.constant 0 : i32
    %c0_i32_1 = arith.constant 0 : i32
    return %c0_i32, %c0_i32_0 : i32, i32
  }
  func.func @transform_3(%arg0: i32, %arg1: i32) -> (i32, i32) {
    %c0_i32 = arith.constant 0 : i32
    %c0_i32_0 = arith.constant 0 : i32
    %c0_i32_1 = arith.constant 0 : i32
    return %c0_i32, %c0_i32_0 : i32, i32
  }
  func.func @transform_4(%arg0: i32, %arg1: i32) -> (i32, i32) {
    %c0_i32 = arith.constant 0 : i32
    %c0_i32_0 = arith.constant 0 : i32
    %c0_i32_1 = arith.constant 0 : i32
    return %c0_i32, %c0_i32_0 : i32, i32
  }
  func.func @transform_5(%arg0: i32, %arg1: i32) -> (i32, i32) {
    %c0_i32 = arith.constant 0 : i32
    %c0_i32_0 = arith.constant 0 : i32
    %c0_i32_1 = arith.constant 0 : i32
    return %c0_i32, %c0_i32_0 : i32, i32
  }
  func.func @transform_6(%arg0: i32, %arg1: i32) -> (i32, i32) {
    %0 = arith.muli %arg1, %arg0 : i32
    %c0_i32 = arith.constant 0 : i32
    %c0_i32_0 = arith.constant 0 : i32
    return %0, %c0_i32 : i32, i32
  }
}

</mosaic_0001>

<llo_original>
// kernel: tpu_custom_call.1
$region0: #{tpu_custom_call.1}
  #allocation0 [shape = 'u32[]', space=smem, size = 0x4, offset = 0x4, fixed_abs, tag = 'smem constant byte address 0x4 - core index']
  #allocation1 [shape = 'u32[144,128]{1,0:T(1,128)}', space=vmem, size = 0x12000, scoped, tag = 'internal scratch']
  #allocation2 [shape = 'bf16[128,128]{1,0:T(16,128)(2,1)}', space=vmem, size = 0x8000, scoped, tag = 'scratch operand']
  #allocation3 [shape = 'f32[2,128]{1,0:T(2,128)}', space=vmem, size = 0x400, scoped, tag = 'scratch operand']
  #allocation4 [shape = 'f32[2,128]{1,0:T(2,128)}', space=vmem, size = 0x400, scoped, tag = 'scratch operand']
  %s0 = inlined_call_operand.hbm [shape: f32[128,128], index: 0, kind: input, shape index: {}]
  %s1 = inlined_call_operand.hbm [shape: bf16[128,128], index: 1, kind: input, shape index: {}]
  %s2 = inlined_call_operand.vmem [shape: f32[1,128], index: 2, kind: input, shape index: {}]
  %s3 = inlined_call_operand.vmem [shape: f32[1,128], index: 3, kind: input, shape index: {}]
  %s4 = inlined_call_operand.hbm [shape: bf16[128,128], index: 4, kind: input, shape index: {}]
  %s5 = inlined_call_operand.vmem [shape: f32[1,128], index: 5, kind: input, shape index: {}]
  %s6 = inlined_call_operand.hbm [shape: f32[128,128], index: 6, kind: output, shape index: {}]
  %s7 = sld [smem:[#allocation0]]
  $region85: #{tpu_custom_call.1} parent=0
    _
  %s9 = ssub.s32 1, %s7
  %s10 = scalar_select 0, %s9, %s7
  $region1: #{tpu_custom_call.1} parent=0
    #allocation5 [shape = 'u8[65536]{0}', space=vmem, size = 0x10000, scoped, tag = 'input window, operand 0']
    #allocation6 [shape = 's32[2]{0}', space=sflag, size = 0x8, scoped, tag = 'scoped memory for tpu_custom_call.1']
    #allocation7 [shape = 's32[2]{0}', space=sflag, size = 0x8, scoped, tag = 'scoped memory for tpu_custom_call.1']
    #allocation8 [shape = 'u8[32768]{0}', space=vmem, size = 0x8000, scoped, tag = 'input window, operand 1, single buffered']
    #allocation9 [shape = 's32[1]{0}', space=sflag, size = 0x4, scoped, tag = 'scoped memory for tpu_custom_call.1']
    #allocation10 [shape = 'u8[32768]{0}', space=vmem, size = 0x8000, scoped, tag = 'input window, operand 4, single buffered']
    #allocation11 [shape = 'u8[65536]{0}', space=vmem, size = 0x10000, scoped, tag = 'output window, operand 0']
    %11 = vsyncpa [#allocation6], 0
    %s12 = scalar_lea.sflag [#allocation6], 1
    %13 = vsyncpa %s12, 0
    %14 = vsyncpa [#allocation9], 0
    %15 = vsyncpa [#allocation7], 0
    %s16 = scalar_lea.sflag [#allocation7], 1
    %17 = vsyncpa %s16, 0
    loop: start=0, step=1, limit=6
    $region2: #{tpu_custom_call.1} parent=1 // loop_pre_header
      _
    $region3: #{tpu_custom_call.1} parent=1 // loop_header
      %s19 = sphi 0, %s23
      %p20 = scmp.ge.s32.totalorder %s19, 6
      %s26 = sphi 0, %s38
      %s27 = sphi 0, %s34
      %s28 = sphi 0, %s26
      %s29 = sphi 0, %s27
      %s30 = sphi 0, %s28
      %s31 = sphi 0, %s29
      %s47 = sphi 0, %s49
      %s50 = sphi 0, %s47
      %s51 = sphi 0, %s50
      %s67 = sphi 0, %s51
      %s71 = sphi 0, %s71
      %s73 = sphi 0, %s71
      %s74 = sphi 0, %s73
      %s88 = sphi 0, %s74
      %s92 = sphi 0, %s92
      %s94 = sphi 0, %s92
      %s95 = sphi 0, %s94
      %s109 = sphi 0, %s95
      %s113 = sphi 0, %s113
      %s115 = sphi 0, %s113
      %s116 = sphi 0, %s115
      %s130 = sphi 0, %s116
      %s134 = sphi 0, %s134
      %s136 = sphi 0, %s134
      %s137 = sphi 0, %s136
      %s151 = sphi 0, %s137
      %s155 = sphi 0, %s155
      %s157 = sphi 0, %s155
      %s158 = sphi 0, %s157
      %s172 = sphi 0, %s158
      %s180 = sphi 0, %s182
      %s183 = sphi 0, %s180
      %s184 = sphi 0, %s183
      %s200 = sphi 0, %s184
    $region4: #{tpu_custom_call.1} parent=1 // loop_header_branch
      %22 = sbr.rel (%p20) target = $region8
    $region5: #{tpu_custom_call.1} parent=1 // loop_body
      %s24 = ssub.s32 %s19, 1
      %s25 = ssub.s32 %s19, 2
      %s32 = sadd.s32 1, %s27
      %p33 = scmp.ge.s32.totalorder %s32, 2
      %s34 = scalar_select %p33, 0, %s32
      %s35 = sadd.s32 1, %s26
      %s36 = scalar_select %p33, %s35, %s26
      %p37 = scmp.ge.s32.totalorder %s36, 2
      %s38 = scalar_select %p37, 0, %s36
      %s39 = ssub.s32 1, %s26
      %s40 = smul.u32 %s27, %s39
      %s41 = sadd.s32 %s40, %s26
      %s42 = ssub.s32 1, %s38
      %s43 = smul.u32 %s34, %s42
      %s44 = sadd.s32 %s43, %s38
      %s45 = ssub.s32 %s41, %s44
      %p46 = scmp.eq.s32.totalorder %s45, 0
      %s48 = sadd.s32 %s47, 1
      %s49 = scalar_select %p46, %s47, %s48
      %p52 = pneg %p46
      %p53 = scmp.eq.s32.totalorder %s19, 3
      %p54 = por %p52, %p53
      %p55 = scmp.ne.s32.totalorder %s47, %s50
      %p56 = scmp.eq.s32.totalorder %s19, 0
      %p57 = por %p55, %p56
      %p58 = scmp.ne.s32.totalorder %s47, %s50
      %p59 = scmp.eq.s32.totalorder %s24, 3
      %p60 = por %p58, %p59
      %p61 = scmp.ne.s32.totalorder %s50, %s51
      %p62 = scmp.eq.s32.totalorder %s24, 0
      %p63 = por %p61, %p62
      %p64 = scmp.ne.s32.totalorder %s50, %s51
      %p65 = scmp.eq.s32.totalorder %s25, 3
      %p66 = por %p64, %p65
      %p68 = scmp.ne.s32.totalorder %s51, %s67
      %p69 = scmp.eq.s32.totalorder %s25, 0
      %p70 = por %p68, %p69
      %s72 = sadd.s32 %s71, 1
      %p75 = scmp.eq.s32.totalorder %s19, 3
      %p76 = scmp.ne.s32.totalorder %s71, %s73
      %p77 = scmp.eq.s32.totalorder %s19, 0
      %p78 = por %p76, %p77
      %p79 = scmp.ne.s32.totalorder %s71, %s73
      %p80 = scmp.eq.s32.totalorder %s24, 3
      %p81 = por %p79, %p80
      %p82 = scmp.ne.s32.totalorder %s73, %s74
      %p83 = scmp.eq.s32.totalorder %s24, 0
      %p84 = por %p82, %p83
      %p85 = scmp.ne.s32.totalorder %s73, %s74
      %p86 = scmp.eq.s32.totalorder %s25, 3
      %p87 = por %p85, %p86
      %p89 = scmp.ne.s32.totalorder %s74, %s88
      %p90 = scmp.eq.s32.totalorder %s25, 0
      %p91 = por %p89, %p90
      %s93 = sadd.s32 %s92, 1
      %p96 = scmp.eq.s32.totalorder %s19, 3
      %p97 = scmp.ne.s32.totalorder %s92, %s94
      %p98 = scmp.eq.s32.totalorder %s19, 0
      %p99 = por %p97, %p98
      %p100 = scmp.ne.s32.totalorder %s92, %s94
      %p101 = scmp.eq.s32.totalorder %s24, 3
      %p102 = por %p100, %p101
      %p103 = scmp.ne.s32.totalorder %s94, %s95
      %p104 = scmp.eq.s32.totalorder %s24, 0
      %p105 = por %p103, %p104
      %p106 = scmp.ne.s32.totalorder %s94, %s95
      %p107 = scmp.eq.s32.totalorder %s25, 3
      %p108 = por %p106, %p107
      %p110 = scmp.ne.s32.totalorder %s95, %s109
      %p111 = scmp.eq.s32.totalorder %s25, 0
      %p112 = por %p110, %p111
      %s114 = sadd.s32 %s113, 1
      %p117 = scmp.eq.s32.totalorder %s19, 3
      %p118 = scmp.ne.s32.totalorder %s113, %s115
      %p119 = scmp.eq.s32.totalorder %s19, 0
      %p120 = por %p118, %p119
      %p121 = scmp.ne.s32.totalorder %s113, %s115
      %p122 = scmp.eq.s32.totalorder %s24, 3
      %p123 = por %p121, %p122
      %p124 = scmp.ne.s32.totalorder %s115, %s116
      %p125 = scmp.eq.s32.totalorder %s24, 0
      %p126 = por %p124, %p125
      %p127 = scmp.ne.s32.totalorder %s115, %s116
      %p128 = scmp.eq.s32.totalorder %s25, 3
      %p129 = por %p127, %p128
      %p131 = scmp.ne.s32.totalorder %s116, %s130
      %p132 = scmp.eq.s32.totalorder %s25, 0
      %p133 = por %p131, %p132
      %s135 = sadd.s32 %s134, 1
      %p138 = scmp.eq.s32.totalorder %s19, 3
      %p139 = scmp.ne.s32.totalorder %s134, %s136
      %p140 = scmp.eq.s32.totalorder %s19, 0
      %p141 = por %p139, %p140
      %p142 = scmp.ne.s32.totalorder %s134, %s136
      %p143 = scmp.eq.s32.totalorder %s24, 3
      %p144 = por %p142, %p143
      %p145 = scmp.ne.s32.totalorder %s136, %s137
      %p146 = scmp.eq.s32.totalorder %s24, 0
      %p147 = por %p145, %p146
      %p148 = scmp.ne.s32.totalorder %s136, %s137
      %p149 = scmp.eq.s32.totalorder %s25, 3
      %p150 = por %p148, %p149
      %p152 = scmp.ne.s32.totalorder %s137, %s151
      %p153 = scmp.eq.s32.totalorder %s25, 0
      %p154 = por %p152, %p153
      %s156 = sadd.s32 %s155, 1
      %p159 = scmp.eq.s32.totalorder %s19, 3
      %p160 = scmp.ne.s32.totalorder %s155, %s157
      %p161 = scmp.eq.s32.totalorder %s19, 0
      %p162 = por %p160, %p161
      %p163 = scmp.ne.s32.totalorder %s155, %s157
      %p164 = scmp.eq.s32.totalorder %s24, 3
      %p165 = por %p163, %p164
      %p166 = scmp.ne.s32.totalorder %s157, %s158
      %p167 = scmp.eq.s32.totalorder %s24, 0
      %p168 = por %p166, %p167
      %p169 = scmp.ne.s32.totalorder %s157, %s158
      %p170 = scmp.eq.s32.totalorder %s25, 3
      %p171 = por %p169, %p170
      %p173 = scmp.ne.s32.totalorder %s158, %s172
      %p174 = scmp.eq.s32.totalorder %s25, 0
      %p175 = por %p173, %p174
      %s176 = smul.u32 %s27, %s26
      %s177 = smul.u32 %s34, %s38
      %s178 = ssub.s32 %s176, %s177
      %p179 = scmp.eq.s32.totalorder %s178, 0
      %s181 = sadd.s32 %s180, 1
      %s182 = scalar_select %p179, %s180, %s181
      %p185 = pneg %p179
      %p186 = scmp.eq.s32.totalorder %s19, 3
      %p187 = por %p185, %p186
      %p188 = scmp.ne.s32.totalorder %s180, %s183
      %p189 = scmp.eq.s32.totalorder %s19, 0
      %p190 = por %p188, %p189
      %p191 = scmp.ne.s32.totalorder %s180, %s183
      %p192 = scmp.eq.s32.totalorder %s24, 3
      %p193 = por %p191, %p192
      %p194 = scmp.ne.s32.totalorder %s183, %s184
      %p195 = scmp.eq.s32.totalorder %s24, 0
      %p196 = por %p194, %p195
      %p197 = scmp.ne.s32.totalorder %s183, %s184
      %p198 = scmp.eq.s32.totalorder %s25, 3
      %p199 = por %p197, %p198
      %p201 = scmp.ne.s32.totalorder %s184, %s200
      %p202 = scmp.eq.s32.totalorder %s25, 0
      %p203 = por %p201, %p202
      %p204 = scmp.le.s32.totalorder 1, %s19
      %p205 = scmp.lt.s32.totalorder %s19, 5
      %p206 = pnand %p204, %p205
      %p207 = pneg %p206
      // Predicated region
      $region9: #{tpu_custom_call.1} parent=5 // pred_check
        _
      $region10: #{tpu_custom_call.1} parent=5 // pred_check_branch
        %209 = sbr.rel (%p206) target = $region12
      $region11: #{tpu_custom_call.1} parent=5 // pred_region
        %s210 = ssub.s32 %s19, 1
        // Predicated region
        $region13: #{tpu_custom_call.1} parent=11 // pred_check
          %p211 = pneg %p84
        $region14: #{tpu_custom_call.1} parent=11 // pred_check_branch
          %213 = sbr.rel (%p211) target = $region16
        $region15: #{tpu_custom_call.1} parent=11 // pred_region
          %s215 = ssub.s32 1024, 1024
          %216 = vsyncadd [#allocation9], %s215
          %s217 = sshll.u32 [#allocation8], 4
          %s218 = int_to_ptr.vmem [resolvable:$true] %s217
          %223 = dma.hbm_to_vmem [thread:$0]  %s1, 1024, %s218, [#allocation9], 64, 64, 4
        $region16: #{tpu_custom_call.1} parent=11 // pred_fallthru
          _
        // Predicated region
        $region17: #{tpu_custom_call.1} parent=11 // pred_check
          %p224 = pneg %p105
        $region18: #{tpu_custom_call.1} parent=11 // pred_check_branch
          %226 = sbr.rel (%p224) target = $region20
        $region19: #{tpu_custom_call.1} parent=11 // pred_region
          _
        $region20: #{tpu_custom_call.1} parent=11 // pred_fallthru
          _
        // Predicated region
        $region21: #{tpu_custom_call.1} parent=11 // pred_check
          %p227 = pneg %p126
        $region22: #{tpu_custom_call.1} parent=11 // pred_check_branch
          %229 = sbr.rel (%p227) target = $region24
        $region23: #{tpu_custom_call.1} parent=11 // pred_region
          _
        $region24: #{tpu_custom_call.1} parent=11 // pred_fallthru
          _
        // Predicated region
        $region25: #{tpu_custom_call.1} parent=11 // pred_check
          %p230 = pneg %p147
        $region26: #{tpu_custom_call.1} parent=11 // pred_check_branch
          %232 = sbr.rel (%p230) target = $region28
        $region27: #{tpu_custom_call.1} parent=11 // pred_region
          %s234 = ssub.s32 1024, 1024
          %235 = vsyncadd [#allocation9], %s234
          %s236 = sshll.u32 [#allocation10], 4
          %s237 = int_to_ptr.vmem [resolvable:$true] %s236
          %242 = dma.hbm_to_vmem [thread:$0]  %s4, 1024, %s237, [#allocation9], 64, 64, 4
        $region28: #{tpu_custom_call.1} parent=11 // pred_fallthru
          _
        // Predicated region
        $region29: #{tpu_custom_call.1} parent=11 // pred_check
          %p243 = pneg %p168
        $region30: #{tpu_custom_call.1} parent=11 // pred_check_branch
          %245 = sbr.rel (%p243) target = $region32
        $region31: #{tpu_custom_call.1} parent=11 // pred_region
          _
        $region32: #{tpu_custom_call.1} parent=11 // pred_fallthru
          _
      $region12: #{tpu_custom_call.1} parent=5 // pred_fallthru
        _
      %p246 = scmp.lt.s32.totalorder %s19, 4
      // Predicated region
      $region33: #{tpu_custom_call.1} parent=5 // pred_check
        %p247 = pneg %p246
      $region34: #{tpu_custom_call.1} parent=5 // pred_check_branch
        %249 = sbr.rel (%p247) target = $region36
      $region35: #{tpu_custom_call.1} parent=5 // pred_region
        // Predicated region
        $region37: #{tpu_custom_call.1} parent=35 // pred_check
          %p250 = pneg %p57
        $region38: #{tpu_custom_call.1} parent=35 // pred_check_branch
          %252 = sbr.rel (%p250) target = $region40
        $region39: #{tpu_custom_call.1} parent=35 // pred_region
          %s253 = sand.u32 %s47, 1
          %s254 = scalar_lea.sflag [#allocation6], %s253
          %s255 = sand.u32 %s47, 1
          %s256 = smul.addr %s255, 64
          %s257 = scalar_lea.vmem [#allocation5], %s256
          %s258 = ssub.s32 1, %s26
          %s259 = smul.u32 %s27, %s258
          %s260 = sadd.s32 %s259, %s26
          %s261 = smul.u32 8, %s260
          %s263 = ssub.s32 1024, 1024
          %264 = vsyncadd %s254, %s263
          %s265 = smul.addr %s261, 128
          %s266 = scalar_lea.hbm %s0, %s265
          %s267 = sshll.u32 %s257, 4
          %s268 = int_to_ptr.vmem [resolvable:$true] %s267
          %273 = dma.hbm_to_vmem [thread:$0]  %s266, 1024, %s268, %s254, 128, 128, 8
        $region40: #{tpu_custom_call.1} parent=35 // pred_fallthru
          _
      $region36: #{tpu_custom_call.1} parent=5 // pred_fallthru
        _
      %p274 = scmp.le.s32.totalorder 1, %s19
      %p275 = scmp.lt.s32.totalorder %s19, 5
      %p276 = pnand %p274, %p275
      %p277 = pneg %p276
      // Predicated region
      $region41: #{tpu_custom_call.1} parent=5 // pred_check
        _
      $region42: #{tpu_custom_call.1} parent=5 // pred_check_branch
        %279 = sbr.rel (%p276) target = $region44
      $region43: #{tpu_custom_call.1} parent=5 // pred_region
        %s280 = ssub.s32 %s19, 1
        %s281 = sand.u32 %s50, 1
        %s282 = scalar_lea.sflag [#allocation6], %s281
        %s283 = sand.u32 %s50, 1
        %s284 = smul.addr %s283, 64
        %s285 = scalar_lea.vmem [#allocation5], %s284
        // Predicated region
        $region45: #{tpu_custom_call.1} parent=43 // pred_check
          %p286 = pneg %p63
        $region46: #{tpu_custom_call.1} parent=43 // pred_check_branch
          %288 = sbr.rel (%p286) target = $region48
        $region47: #{tpu_custom_call.1} parent=43 // pred_region
          %289 = dma.done %s282, 1024
        $region48: #{tpu_custom_call.1} parent=43 // pred_fallthru
          _
        // Predicated region
        $region49: #{tpu_custom_call.1} parent=43 // pred_check
          %p290 = pneg %p84
        $region50: #{tpu_custom_call.1} parent=43 // pred_check_branch
          %292 = sbr.rel (%p290) target = $region52
        $region51: #{tpu_custom_call.1} parent=43 // pred_region
          %293 = dma.done [#allocation9], 1024
        $region52: #{tpu_custom_call.1} parent=43 // pred_fallthru
          _
        // Predicated region
        $region53: #{tpu_custom_call.1} parent=43 // pred_check
          %p294 = pneg %p147
        $region54: #{tpu_custom_call.1} parent=43 // pred_check_branch
          %296 = sbr.rel (%p294) target = $region56
        $region55: #{tpu_custom_call.1} parent=43 // pred_region
          %297 = dma.done [#allocation9], 1024
        $region56: #{tpu_custom_call.1} parent=43 // pred_fallthru
          _
        %s298 = sand.u32 %s50, 1
        %s299 = scalar_lea.sflag [#allocation6], %s298
        %s300 = sand.u32 %s50, 1
        %s301 = smul.addr %s300, 64
        %s302 = scalar_lea.vmem [#allocation5], %s301
        %p303 = pneg %p63
        %p304 = pneg %p60
        %p305 = pneg %p84
        %p306 = pneg %p81
        %p307 = pneg %p105
        %p308 = pneg %p102
        %p309 = pneg %p126
        %p310 = pneg %p123
        %p311 = pneg %p147
        %p312 = pneg %p144
        %p313 = pneg %p168
        %p314 = pneg %p165
        %p315 = pneg %p196
        %p316 = pneg %p193
        %s317 = sand.u32 %s183, 1
        %s318 = scalar_lea.sflag [#allocation7], %s317
        %s319 = sand.u32 %s183, 1
        %s320 = smul.addr %s319, 64
        %s321 = scalar_lea.vmem [#allocation11], %s320
        %s322 = ssub.s32 1, %s28
        %s323 = smul.u32 %s29, %s322
        %s324 = sadd.s32 %s323, %s28
        %s325 = smul.u32 8, %s324
        %s326 = smul.u32 %s29, %s28
        %s327 = smul.u32 8, %s326
        %s329 = smul.u32 %s29, 64
        %p330 = scmp.eq.s32.totalorder %s28, 0
        %p331 = scmp.eq.s32.totalorder %s29, 0
        %p332 = pnand %p330, %p331
        %p333 = pneg %p332
        // Predicated region
        $region57: #{tpu_custom_call.1} parent=43 // pred_check
          _
        $region58: #{tpu_custom_call.1} parent=43 // pred_check_branch
          %335 = sbr.rel (%p332) target = $region60
        $region59: #{tpu_custom_call.1} parent=43 // pred_region
          %336 = vst [vmem:[#allocation3] sm:$0x3] 0.0
        $region60: #{tpu_custom_call.1} parent=43 // pred_fallthru
          _
        // Predicated region
        $region61: #{tpu_custom_call.1} parent=43 // pred_check
          %p337 = pneg %p330
        $region62: #{tpu_custom_call.1} parent=43 // pred_check_branch
          %339 = sbr.rel (%p337) target = $region64
        $region63: #{tpu_custom_call.1} parent=43 // pred_region
          %v340 = vld [vmem:[%s285] sm:$0xff]
          %v341 = vld [vmem:[%s285 + $0x8] sm:$0xff]
          %v342 = vld [vmem:[%s285 + $0x10] sm:$0xff]
          %v343 = vld [vmem:[%s285 + $0x18] sm:$0xff]
          %v344 = vld [vmem:[%s285 + $0x20] sm:$0xff]
          %v345 = vld [vmem:[%s285 + $0x28] sm:$0xff]
          %v346 = vld [vmem:[%s285 + $0x30] sm:$0xff]
          %v347 = vld [vmem:[%s285 + $0x38] sm:$0xff]
          %v348 = vpack.c.bf16 %v341, %v340
          %v349 = vpack.c.bf16 %v343, %v342
          %v350 = vpack.c.bf16 %v345, %v344
          %v351 = vpack.c.bf16 %v347, %v346
          %v352 = vld [vmem:[#allocation8] sm:$0xf]
          %v353 = vld [vmem:[#allocation8 + $0x4] sm:$0xf]
          %v354 = vld [vmem:[#allocation8 + $0x8] sm:$0xf]
          %v355 = vld [vmem:[#allocation8 + $0xc] sm:$0xf]
          %v356 = vld [vmem:[#allocation8 + $0x10] sm:$0xf]
          %v357 = vld [vmem:[#allocation8 + $0x14] sm:$0xf]
          %v358 = vld [vmem:[#allocation8 + $0x18] sm:$0xf]
          %v359 = vld [vmem:[#allocation8 + $0x1c] sm:$0xf]
          %v360 = vld [vmem:[#allocation8 + $0x20] sm:$0xf]
          %v361 = vld [vmem:[#allocation8 + $0x24] sm:$0xf]
          %v362 = vld [vmem:[#allocation8 + $0x28] sm:$0xf]
          %v363 = vld [vmem:[#allocation8 + $0x2c] sm:$0xf]
          %v364 = vld [vmem:[#allocation8 + $0x30] sm:$0xf]
          %v365 = vld [vmem:[#allocation8 + $0x34] sm:$0xf]
          %v366 = vld [vmem:[#allocation8 + $0x38] sm:$0xf]
          %v367 = vld [vmem:[#allocation8 + $0x3c] sm:$0xf]
          %v384 = vunpack.c.l.b16 %v352
          %v385 = vunpack.c.l.b16 %v353
          %v386 = vunpack.c.l.b16 %v354
          %v387 = vunpack.c.l.b16 %v355
          %v388 = vunpack.c.l.b16 %v356
          %v389 = vunpack.c.l.b16 %v357
          %v390 = vunpack.c.l.b16 %v358
          %v391 = vunpack.c.l.b16 %v359
          %v392 = vunpack.c.l.b16 %v360
          %v393 = vunpack.c.l.b16 %v361
          %v394 = vunpack.c.l.b16 %v362
          %v395 = vunpack.c.l.b16 %v363
          %v396 = vunpack.c.l.b16 %v364
          %v397 = vunpack.c.l.b16 %v365
          %v398 = vunpack.c.l.b16 %v366
          %v399 = vunpack.c.l.b16 %v367
          %v400 = vpack.c.b16 %v385, %v384
          %v401 = vpack.c.b16 %v387, %v386
          %v402 = vpack.c.b16 %v389, %v388
          %v403 = vpack.c.b16 %v391, %v390
          %v404 = vpack.c.b16 %v393, %v392
          %v405 = vpack.c.b16 %v395, %v394
          %v406 = vpack.c.b16 %v397, %v396
          %v407 = vpack.c.b16 %v399, %v398
          %416 = vmatprep.subr.bf16.mxu0 0
          %417 = vmatpush1.bf16.msra.mxu0 %v400
          %418 = vmatprep.subr.bf16.mxu0 0
          %419 = vmatpush1.bf16.msra.mxu0 %v401
          %420 = vmatprep.subr.bf16.mxu0 0
          %421 = vmatpush1.bf16.msra.mxu0 %v402
          %422 = vmatprep.subr.bf16.mxu0 0
          %423 = vmatpush1.bf16.msra.mxu0 %v403
          %424 = vmatprep.subr.bf16.mxu0 0
          %425 = vmatpush1.bf16.msra.mxu0 %v404
          %426 = vmatprep.subr.bf16.mxu0 0
          %427 = vmatpush1.bf16.msra.mxu0 %v405
          %428 = vmatprep.subr.bf16.mxu0 0
          %429 = vmatpush1.bf16.msra.mxu0 %v406
          %430 = vmatprep.subr.bf16.mxu0 0
          %431 = vmatpush1.bf16.msra.mxu0 %v407
          %432 = vmatprep.subr.bf16.mxu0 0
          %433 = vmatpush1.bf16.msra.mxu0 0
          %434 = vmatprep.subr.bf16.mxu0 0
          %435 = vmatpush1.bf16.msra.mxu0 0
          %436 = vmatprep.subr.bf16.mxu0 0
          %437 = vmatpush1.bf16.msra.mxu0 0
          %438 = vmatprep.subr.bf16.mxu0 0
          %439 = vmatpush1.bf16.msra.mxu0 0
          %440 = vmatprep.subr.bf16.mxu0 0
          %441 = vmatpush1.bf16.msra.mxu0 0
          %442 = vmatprep.subr.bf16.mxu0 0
          %443 = vmatpush1.bf16.msra.mxu0 0
          %444 = vmatprep.subr.bf16.mxu0 0
          %445 = vmatpush1.bf16.msra.mxu0 0
          %446 = vmatprep.subr.bf16.mxu0 0
          %447 = vmatpush1.bf16.msra.mxu0 0
          %448 = vmatprep.mubr.bf16.mxu0 0
          %449 = vmatmul.mubr.bf16.gmra.mrb[0].mxu0 %v348
          %v450 = vpop.f32.mrb[0].mxu0
          %v451 = vadd.f32 0.0, %v450
          %v452 = vpop.f32.mrb[0].mxu0
          %v453 = vpop.f32.mrb[0].mxu0
          %v454 = vadd.f32 0.0, %v453
          %v455 = vpop.f32.mrb[0].mxu0
          %456 = vmatprep.mubr.bf16.mxu0 0
          %457 = vmatmul.mubr.bf16.gmra.mrb[0].mxu0 %v349
          %v458 = vpop.f32.mrb[0].mxu0
          %v459 = vadd.f32 0.0, %v458
          %v460 = vpop.f32.mrb[0].mxu0
          %v461 = vpop.f32.mrb[0].mxu0
          %v462 = vadd.f32 0.0, %v461
          %v463 = vpop.f32.mrb[0].mxu0
          %464 = vmatprep.mubr.bf16.mxu0 0
          %465 = vmatmul.mubr.bf16.gmra.mrb[0].mxu0 %v350
          %v466 = vpop.f32.mrb[0].mxu0
          %v467 = vadd.f32 0.0, %v466
          %v468 = vpop.f32.mrb[0].mxu0
          %v469 = vpop.f32.mrb[0].mxu0
          %v470 = vadd.f32 0.0, %v469
          %v471 = vpop.f32.mrb[0].mxu0
          %472 = vmatprep.mubr.bf16.mxu0 0
          %473 = vmatmul.mubr.bf16.gmra.mrb[0].mxu0 %v351
          %v474 = vpop.f32.mrb[0].mxu0
          %v475 = vadd.f32 0.0, %v474
          %v476 = vpop.f32.mrb[0].mxu0
          %v477 = vpop.f32.mrb[0].mxu0
          %v478 = vadd.f32 0.0, %v477
          %v479 = vpop.f32.mrb[0].mxu0
          %480 = vdwg.mxu0
          %v481 = vpack.c.bf16 %v454, %v451
          %v482 = vpack.c.bf16 %v462, %v459
          %v483 = vpack.c.bf16 %v470, %v467
          %v484 = vpack.c.bf16 %v478, %v475
          %s485 = sshra.s32 %s329, 4
          %s486 = sand.u32 %s329, 15
          %s487 = smul.addr %s485, 8
          %s488 = scalar_lea.vmem [#allocation2], %s487
          %489 = vst [vmem:[%s488] sm:$0xff] %v481
          %490 = vst [vmem:[%s488 + $0x8] sm:$0xff] %v482
          %491 = vst [vmem:[%s488 + $0x10] sm:$0xff] %v483
          %492 = vst [vmem:[%s488 + $0x18] sm:$0xff] %v484
          %v493 = vld [vmem:[#allocation3] sm:$0x1]
          %v494 = vadd.f32 %v451, %v454
          %v495 = vadd.f32 %v494, %v459
          %v496 = vadd.f32 %v495, %v462
          %v497 = vadd.f32 %v496, %v467
          %v498 = vadd.f32 %v497, %v470
          %v499 = vadd.f32 %v498, %v475
          %v500 = vadd.f32 %v499, %v478
          %v501 = vrot.slane %v500, 4
          %v502 = vadd.f32 %v500, %v501
          %v503 = vrot.slane %v502, 2
          %v504 = vadd.f32 %v502, %v503
          %v505 = vrot.slane %v504, 1
          %v506 = vadd.f32 %v504, %v505
          %v507 = vadd.f32 %v493, %v506
          %508 = vst [vmem:[#allocation3] sm:$0x1] %v507
          %v509 = vld [vmem:[#allocation3 + $0x1] sm:$0x1]
          %v510 = vmul.f32 %v451, %v451
          %v511 = vmul.f32 %v454, %v454
          %v512 = vmul.f32 %v459, %v459
          %v513 = vmul.f32 %v462, %v462
          %v514 = vmul.f32 %v467, %v467
          %v515 = vmul.f32 %v470, %v470
          %v516 = vmul.f32 %v475, %v475
          %v517 = vmul.f32 %v478, %v478
          %v518 = vadd.f32 %v510, %v511
          %v519 = vadd.f32 %v518, %v512
          %v520 = vadd.f32 %v519, %v513
          %v521 = vadd.f32 %v520, %v514
          %v522 = vadd.f32 %v521, %v515
          %v523 = vadd.f32 %v522, %v516
          %v524 = vadd.f32 %v523, %v517
          %v525 = vrot.slane %v524, 4
          %v526 = vadd.f32 %v524, %v525
          %v527 = vrot.slane %v526, 2
          %v528 = vadd.f32 %v526, %v527
          %v529 = vrot.slane %v528, 1
          %v530 = vadd.f32 %v528, %v529
          %v531 = vadd.f32 %v509, %v530
          %532 = vst [vmem:[#allocation3 + $0x1] sm:$0x1] %v531
        $region64: #{tpu_custom_call.1} parent=43 // pred_fallthru
          _
        %p533 = scmp.eq.s32.totalorder %s28, 1
        %p534 = pnand %p533, %p331
        %p535 = pneg %p534
        // Predicated region
        $region65: #{tpu_custom_call.1} parent=43 // pred_check
          _
        $region66: #{tpu_custom_call.1} parent=43 // pred_check_branch
          %537 = sbr.rel (%p534) target = $region68
        $region67: #{tpu_custom_call.1} parent=43 // pred_region
          %v538 = vld [vmem:[#allocation3] sm:$0x1]
          %v539 = vmul.f32 %v538, 0.008928572
          %v540 = vld [vmem:[#allocation3 + $0x1] sm:$0x1]
          %v541 = vmul.f32 %v540, 0.008928572
          %v542 = vmul.f32 %v539, %v539
          %v543 = vsub.f32 %v541, %v542
          %v544 = vmax.f32 %v543, 0.0
          %v545 = vld [vmem:[%s2] sm:$0x1]
          %v546 = vadd.f32 %v544, 1e-05
          %v547 = vrsqrt.pop %v546
          %v548 = vmul.f32 %v545, %v547
          %549 = vst [vmem:[#allocation4] sm:$0x1] %v548
          %v550 = vld [vmem:[%s3] sm:$0x1]
          %v551 = vmul.f32 %v539, %v548
          %v552 = vsub.f32 %v550, %v551
          %553 = vst [vmem:[#allocation4 + $0x1] sm:$0x1] %v552
        $region68: #{tpu_custom_call.1} parent=43 // pred_fallthru
          _
        // Predicated region
        $region69: #{tpu_custom_call.1} parent=43 // pred_check
          %p554 = pneg %p533
        $region70: #{tpu_custom_call.1} parent=43 // pred_check_branch
          %556 = sbr.rel (%p554) target = $region72
        $region71: #{tpu_custom_call.1} parent=43 // pred_region
          %s557 = sshra.s32 %s329, 4
          %s558 = sand.u32 %s329, 15
          %s559 = smul.addr %s557, 8
          %s560 = scalar_lea.vmem [#allocation2], %s559
          %v561 = vld [vmem:[%s560] sm:$0xff]
          %v562 = vld [vmem:[%s560 + $0x8] sm:$0xff]
          %v563 = vld [vmem:[%s560 + $0x10] sm:$0xff]
          %v564 = vld [vmem:[%s560 + $0x18] sm:$0xff]
          %v565 = vunpack.c.l.bf16 %v561
          %v566 = vunpack.c.h.bf16 %v561
          %v567 = vunpack.c.l.bf16 %v562
          %v568 = vunpack.c.h.bf16 %v562
          %v569 = vunpack.c.l.bf16 %v563
          %v570 = vunpack.c.h.bf16 %v563
          %v571 = vunpack.c.l.bf16 %v564
          %v572 = vunpack.c.h.bf16 %v564
          %v573 = vld [vmem:[#allocation4] sm:$0x1]
          %v574 = vlaneseq
          %v575 = vshrl.u32 %v574, 7
          %v576 = vsub.s32 0, %v575
          %v577 = vrot.slane %v573, %v576
          %v578 = vmul.f32 %v565, %v577
          %v579 = vmul.f32 %v566, %v577
          %v580 = vmul.f32 %v567, %v577
          %v581 = vmul.f32 %v568, %v577
          %v582 = vmul.f32 %v569, %v577
          %v583 = vmul.f32 %v570, %v577
          %v584 = vmul.f32 %v571, %v577
          %v585 = vmul.f32 %v572, %v577
          %v586 = vld [vmem:[#allocation4 + $0x1] sm:$0x1]
          %v587 = vlaneseq
          %v588 = vshrl.u32 %v587, 7
          %v589 = vsub.s32 0, %v588
          %v590 = vrot.slane %v586, %v589
          %v591 = vadd.f32 %v578, %v590
          %v592 = vadd.f32 %v579, %v590
          %v593 = vadd.f32 %v580, %v590
          %v594 = vadd.f32 %v581, %v590
          %v595 = vadd.f32 %v582, %v590
          %v596 = vadd.f32 %v583, %v590
          %v597 = vadd.f32 %v584, %v590
          %v598 = vadd.f32 %v585, %v590
          %v599 = vmax.f32 %v591, 0.0
          %v600 = vmax.f32 %v592, 0.0
          %v601 = vmax.f32 %v593, 0.0
          %v602 = vmax.f32 %v594, 0.0
          %v603 = vmax.f32 %v595, 0.0
          %v604 = vmax.f32 %v596, 0.0
          %v605 = vmax.f32 %v597, 0.0
          %v606 = vmax.f32 %v598, 0.0
          %v607 = vpack.c.bf16 %v600, %v599
          %v608 = vpack.c.bf16 %v602, %v601
          %v609 = vpack.c.bf16 %v604, %v603
          %v610 = vpack.c.bf16 %v606, %v605
          %v611 = vld [vmem:[#allocation10] sm:$0xf]
          %v612 = vld [vmem:[#allocation10 + $0x4] sm:$0xf]
          %v613 = vld [vmem:[#allocation10 + $0x8] sm:$0xf]
          %v614 = vld [vmem:[#allocation10 + $0xc] sm:$0xf]
          %v615 = vld [vmem:[#allocation10 + $0x10] sm:$0xf]
          %v616 = vld [vmem:[#allocation10 + $0x14] sm:$0xf]
          %v617 = vld [vmem:[#allocation10 + $0x18] sm:$0xf]
          %v618 = vld [vmem:[#allocation10 + $0x1c] sm:$0xf]
          %v619 = vld [vmem:[#allocation10 + $0x20] sm:$0xf]
          %v620 = vld [vmem:[#allocation10 + $0x24] sm:$0xf]
          %v621 = vld [vmem:[#allocation10 + $0x28] sm:$0xf]
          %v622 = vld [vmem:[#allocation10 + $0x2c] sm:$0xf]
          %v623 = vld [vmem:[#allocation10 + $0x30] sm:$0xf]
          %v624 = vld [vmem:[#allocation10 + $0x34] sm:$0xf]
          %v625 = vld [vmem:[#allocation10 + $0x38] sm:$0xf]
          %v626 = vld [vmem:[#allocation10 + $0x3c] sm:$0xf]
          %v627 = vld [vmem:[%s5] sm:$0x1]
          %v629 = vlaneseq
          %v630 = vshrl.u32 %v629, 7
          %v631 = vsub.s32 0, %v630
          %v632 = vrot.slane %v627, %v631
          %v650 = vunpack.c.l.b16 %v611
          %v651 = vunpack.c.l.b16 %v612
          %v652 = vunpack.c.l.b16 %v613
          %v653 = vunpack.c.l.b16 %v614
          %v654 = vunpack.c.l.b16 %v615
          %v655 = vunpack.c.l.b16 %v616
          %v656 = vunpack.c.l.b16 %v617
          %v657 = vunpack.c.l.b16 %v618
          %v658 = vunpack.c.l.b16 %v619
          %v659 = vunpack.c.l.b16 %v620
          %v660 = vunpack.c.l.b16 %v621
          %v661 = vunpack.c.l.b16 %v622
          %v662 = vunpack.c.l.b16 %v623
          %v663 = vunpack.c.l.b16 %v624
          %v664 = vunpack.c.l.b16 %v625
          %v665 = vunpack.c.l.b16 %v626
          %v666 = vpack.c.b16 %v651, %v650
          %v667 = vpack.c.b16 %v653, %v652
          %v668 = vpack.c.b16 %v655, %v654
          %v669 = vpack.c.b16 %v657, %v656
          %v670 = vpack.c.b16 %v659, %v658
          %v671 = vpack.c.b16 %v661, %v660
          %v672 = vpack.c.b16 %v663, %v662
          %v673 = vpack.c.b16 %v665, %v664
          %682 = vmatprep.subr.bf16.mxu0 0
          %683 = vmatpush1.bf16.msra.mxu0 %v666
          %684 = vmatprep.subr.bf16.mxu0 0
          %685 = vmatpush1.bf16.msra.mxu0 %v667
          %686 = vmatprep.subr.bf16.mxu0 0
          %687 = vmatpush1.bf16.msra.mxu0 %v668
          %688 = vmatprep.subr.bf16.mxu0 0
          %689 = vmatpush1.bf16.msra.mxu0 %v669
          %690 = vmatprep.subr.bf16.mxu0 0
          %691 = vmatpush1.bf16.msra.mxu0 %v670
          %692 = vmatprep.subr.bf16.mxu0 0
          %693 = vmatpush1.bf16.msra.mxu0 %v671
          %694 = vmatprep.subr.bf16.mxu0 0
          %695 = vmatpush1.bf16.msra.mxu0 %v672
          %696 = vmatprep.subr.bf16.mxu0 0
          %697 = vmatpush1.bf16.msra.mxu0 %v673
          %698 = vmatprep.subr.bf16.mxu0 0
          %699 = vmatpush1.bf16.msra.mxu0 0
          %700 = vmatprep.subr.bf16.mxu0 0
          %701 = vmatpush1.bf16.msra.mxu0 0
          %702 = vmatprep.subr.bf16.mxu0 0
          %703 = vmatpush1.bf16.msra.mxu0 0
          %704 = vmatprep.subr.bf16.mxu0 0
          %705 = vmatpush1.bf16.msra.mxu0 0
          %706 = vmatprep.subr.bf16.mxu0 0
          %707 = vmatpush1.bf16.msra.mxu0 0
          %708 = vmatprep.subr.bf16.mxu0 0
          %709 = vmatpush1.bf16.msra.mxu0 0
          %710 = vmatprep.subr.bf16.mxu0 0
          %711 = vmatpush1.bf16.msra.mxu0 0
          %712 = vmatprep.subr.bf16.mxu0 0
          %713 = vmatpush1.bf16.msra.mxu0 0
          %714 = vmatprep.mubr.bf16.mxu0 0
          %715 = vmatmul.mubr.bf16.gmra.mrb[0].mxu0 %v607
          %v716 = vpop.f32.mrb[0].mxu0
          %v717 = vadd.f32 %v632, %v716
          %v718 = vpop.f32.mrb[0].mxu0
          %v719 = vpop.f32.mrb[0].mxu0
          %v720 = vadd.f32 %v632, %v719
          %v721 = vpop.f32.mrb[0].mxu0
          %722 = vmatprep.mubr.bf16.mxu0 0
          %723 = vmatmul.mubr.bf16.gmra.mrb[0].mxu0 %v608
          %v724 = vpop.f32.mrb[0].mxu0
          %v725 = vadd.f32 %v632, %v724
          %v726 = vpop.f32.mrb[0].mxu0
          %v727 = vpop.f32.mrb[0].mxu0
          %v728 = vadd.f32 %v632, %v727
          %v729 = vpop.f32.mrb[0].mxu0
          %730 = vmatprep.mubr.bf16.mxu0 0
          %731 = vmatmul.mubr.bf16.gmra.mrb[0].mxu0 %v609
          %v732 = vpop.f32.mrb[0].mxu0
          %v733 = vadd.f32 %v632, %v732
          %v734 = vpop.f32.mrb[0].mxu0
          %v735 = vpop.f32.mrb[0].mxu0
          %v736 = vadd.f32 %v632, %v735
          %v737 = vpop.f32.mrb[0].mxu0
          %738 = vmatprep.mubr.bf16.mxu0 0
          %739 = vmatmul.mubr.bf16.gmra.mrb[0].mxu0 %v610
          %v740 = vpop.f32.mrb[0].mxu0
          %v741 = vadd.f32 %v632, %v740
          %v742 = vpop.f32.mrb[0].mxu0
          %v743 = vpop.f32.mrb[0].mxu0
          %v744 = vadd.f32 %v632, %v743
          %v745 = vpop.f32.mrb[0].mxu0
          %746 = vdwg.mxu0
          %747 = vst [vmem:[%s321] sm:$0xff] %v717
          %748 = vst [vmem:[%s321 + $0x8] sm:$0xff] %v720
          %749 = vst [vmem:[%s321 + $0x10] sm:$0xff] %v725
          %750 = vst [vmem:[%s321 + $0x18] sm:$0xff] %v728
          %751 = vst [vmem:[%s321 + $0x20] sm:$0xff] %v733
          %752 = vst [vmem:[%s321 + $0x28] sm:$0xff] %v736
          %753 = vst [vmem:[%s321 + $0x30] sm:$0xff] %v741
          %754 = vst [vmem:[%s321 + $0x38] sm:$0xff] %v744
        $region72: #{tpu_custom_call.1} parent=43 // pred_fallthru
          _
        %s755 = sand.u32 %s183, 1
        %s756 = scalar_lea.sflag [#allocation7], %s755
        %s757 = sand.u32 %s183, 1
        %s758 = smul.addr %s757, 64
        %s759 = scalar_lea.vmem [#allocation11], %s758
        // Predicated region
        $region73: #{tpu_custom_call.1} parent=43 // pred_check
          %p760 = pneg %p193
        $region74: #{tpu_custom_call.1} parent=43 // pred_check_branch
          %762 = sbr.rel (%p760) target = $region76
        $region75: #{tpu_custom_call.1} parent=43 // pred_region
          %s763 = smul.u32 %s29, %s28
          %s764 = smul.u32 8, %s763
          %s766 = ssub.s32 1024, 1024
          %767 = vsyncadd %s756, %s766
          %s768 = smul.addr %s764, 128
          %s769 = scalar_lea.hbm %s6, %s768
          %s770 = sshll.u32 %s759, 4
          %s771 = int_to_ptr.vmem [resolvable:$true] %s770
          %776 = dma.vmem_to_hbm [thread:$0]  %s771, 1024, %s769, %s756, 128, 128, 8
        $region76: #{tpu_custom_call.1} parent=43 // pred_fallthru
          _
      $region44: #{tpu_custom_call.1} parent=5 // pred_fallthru
        _
      %p777 = scmp.le.s32.totalorder 2, %s19
      // Predicated region
      $region77: #{tpu_custom_call.1} parent=5 // pred_check
        %p778 = pneg %p777
      $region78: #{tpu_custom_call.1} parent=5 // pred_check_branch
        %780 = sbr.rel (%p778) target = $region80
      $region79: #{tpu_custom_call.1} parent=5 // pred_region
        %s781 = ssub.s32 %s19, 2
        // Predicated region
        $region81: #{tpu_custom_call.1} parent=79 // pred_check
          %p782 = pneg %p199
        $region82: #{tpu_custom_call.1} parent=79 // pred_check_branch
          %784 = sbr.rel (%p782) target = $region84
        $region83: #{tpu_custom_call.1} parent=79 // pred_region
          %s785 = sand.u32 %s184, 1
          %s786 = scalar_lea.sflag [#allocation7], %s785
          %s787 = sand.u32 %s184, 1
          %s788 = smul.addr %s787, 64
          %s789 = scalar_lea.vmem [#allocation11], %s788
          %790 = dma.done %s786, 1024
        $region84: #{tpu_custom_call.1} parent=79 // pred_fallthru
          _
      $region80: #{tpu_custom_call.1} parent=5 // pred_fallthru
        _
    $region6: #{tpu_custom_call.1} parent=1 // loop_footer
      %s23 = sadd.s32 1, %s19
    $region7: #{tpu_custom_call.1} parent=1 // loop_footer_branch
      %18 = sbr.rel target = $region3
    $region8: #{tpu_custom_call.1} parent=1 // loop_exit
      _
    %791 = vsyncpa [#allocation6], 1
    %s792 = scalar_lea.sflag [#allocation6], 1
    %793 = vsyncpa %s792, 1
    %794 = vsyncpa [#allocation9], 1
    %795 = vsyncpa [#allocation7], 1
    %s796 = scalar_lea.sflag [#allocation7], 1
    %797 = vsyncpa %s796, 1

</llo_original>
